<compile_context>
chip_gen: v7x
topology: tpu7x:2x2x1
jax: 0.10.0
libtpu: 0.0.40
codegen_flags: <defaults>
</compile_context>

<pallas_src>
import jax
import jax.numpy as jnp
import numpy as np
from jax import lax
from jax.experimental import pallas as pl
from jax.experimental.pallas import tpu as pltpu

ALPHA = 0.8
BCE_RATIO = 0.2
BETA = 0.8
GAMMA = 2

_LANE = 128
_TR_MAX = 1024  # rows per tile -> 512 KiB per input block (f32)


def _make_bft_kernel(tr, steps_per_shard, full_blocks, n_valid):
    """Kernel accumulating per-lane partials of [TP, sum_p, sum_t, ce]."""

    def kernel(p_ref, t_ref, out_ref, acc_tp, acc_p, acc_t, acc_ce):
        c = pl.program_id(0)          # shard (TensorCore) axis, "parallel"
        i = pl.program_id(1)          # streaming axis, "arbitrary"

        @pl.when(i == 0)
        def _init():
            acc_tp[...] = jnp.zeros_like(acc_tp)
            acc_p[...] = jnp.zeros_like(acc_p)
            acc_t[...] = jnp.zeros_like(acc_t)
            acc_ce[...] = jnp.zeros_like(acc_ce)

        p = p_ref[...].astype(jnp.float32)
        t = t_ref[...].astype(jnp.float32)

        # Nominal (unclamped) block index -> global element offset.
        nominal = c * steps_per_shard + i

        def accum(pm, tm, p_for_log, mask):
            # PyTorch F.binary_cross_entropy clamps log() at -100.
            log_p = jnp.maximum(jnp.log(p_for_log), -100.0)
            log_1mp = jnp.maximum(jnp.log(1.0 - p_for_log), -100.0)
            # Positive-sum form (sign flipped in glue):
            #   s = t*log(p) + (1-t)*log(1-p) = t*(log_p - log_1mp) + log_1mp
            s = tm * (log_p - log_1mp) + log_1mp
            if mask is not None:
                s = jnp.where(mask, s, 0.0)
            acc_tp[...] += jnp.sum(pm * tm, axis=0, keepdims=True)
            acc_p[...] += jnp.sum(pm, axis=0, keepdims=True)
            acc_t[...] += jnp.sum(tm, axis=0, keepdims=True)
            acc_ce[...] += jnp.sum(s, axis=0, keepdims=True)

        # Hot path: fully-valid tiles, no masking.
        @pl.when(nominal < full_blocks)
        def _full():
            accum(p, t, p, None)

        # Tail path: partial final tile and any out-of-range duplicate tiles
        # (their data is clamped/undefined -> fully masked to zero).
        @pl.when(nominal >= full_blocks)
        def _partial():
            base = nominal * (tr * _LANE)
            row = lax.broadcasted_iota(jnp.int32, (tr, _LANE), 0)
            lane = lax.broadcasted_iota(jnp.int32, (tr, _LANE), 1)
            flat = base + row * _LANE + lane
            mask = flat < n_valid
            pm = jnp.where(mask, p, 0.0)
            tm = jnp.where(mask, t, 0.0)
            ps = jnp.where(mask, p, 0.5)   # log-safe placeholder (no NaN/inf)
            accum(pm, tm, ps, mask)

        @pl.when(i == steps_per_shard - 1)
        def _finalize():
            out_ref[0] = jnp.concatenate(
                [acc_tp[...], acc_p[...], acc_t[...], acc_ce[...]], axis=0)

    return kernel


def _bft_partial_sums(p2, t2, n_valid, tr, rows):
    """Returns (num_shards, 4, 128) per-lane partials: [TP, sum_p, sum_t, ce]."""
    total_blocks = -(-rows // tr)
    num_shards = 2 if total_blocks >= 2 else 1
    steps = -(-total_blocks // num_shards)
    full_blocks = n_valid // (tr * _LANE)

    def in_map(c, i):
        # Clamp so every DMA stays in-bounds; duplicates are masked in-kernel.
        return (jnp.minimum(c * steps + i, total_blocks - 1), 0)

    kernel = _make_bft_kernel(tr, steps, full_blocks, n_valid)

    bytes_in = (p2.size * p2.dtype.itemsize + t2.size * t2.dtype.itemsize)
    cost = pl.CostEstimate(
        flops=12 * n_valid,
        transcendentals=2 * n_valid,
        bytes_accessed=bytes_in + num_shards * 4 * _LANE * 4,
    )

    out = pl.pallas_call(
        kernel,
        out_shape=jax.ShapeDtypeStruct((num_shards, 4, _LANE), jnp.float32),
        grid_spec=pltpu.PrefetchScalarGridSpec(
            num_scalar_prefetch=0,
            grid=(num_shards, steps),
            in_specs=[
                pl.BlockSpec((tr, _LANE), in_map),
                pl.BlockSpec((tr, _LANE), in_map),
            ],
            out_specs=pl.BlockSpec((1, 4, _LANE), lambda c, i: (c, 0, 0)),
            scratch_shapes=[pltpu.VMEM((1, _LANE), jnp.float32)] * 4,
        ),
        compiler_params=pltpu.CompilerParams(
            dimension_semantics=("parallel", "arbitrary"),
            vmem_limit_bytes=32 * 1024 * 1024,
        ),
        cost_estimate=cost,
    )(p2, t2)
    return out


def bft_loss(preds, targets, smooth=1.0, alpha=ALPHA, beta=BETA, gamma=GAMMA,
             bce_ratio=BCE_RATIO):
    """JAX/Pallas equivalent of BFTLoss.forward."""
    p_flat = preds.reshape(-1)
    t_flat = targets.reshape(-1)
    n = p_flat.shape[0]

    # Only pad when n isn't lane-aligned (the padded tail is masked in-kernel).
    if n % _LANE != 0:
        pad = _LANE - (n % _LANE)
        p_flat = jnp.pad(p_flat, (0, pad))
        t_flat = jnp.pad(t_flat, (0, pad))
    rows = p_flat.shape[0] // _LANE
    p2 = p_flat.reshape(rows, _LANE)   # pure reshape, no HBM copy
    t2 = t_flat.reshape(rows, _LANE)

    tr = rows if rows <= _TR_MAX else _TR_MAX

    out = _bft_partial_sums(p2, t2, n, tr, rows)
    parts = jnp.sum(out, axis=(0, 2))          # (4,)
    tp, sum_p, sum_t, ce_sum = parts[0], parts[1], parts[2], parts[3]
    fp = sum_p - tp                            # sum((1-t)*p)
    fn = sum_t - tp                            # sum(t*(1-p))

    tversky = (tp + smooth) / (tp + alpha * fp + beta * fn + smooth)
    focal_tversky = (1.0 - tversky) ** gamma
    bce = -ce_sum / jnp.float32(n)             # mean over the true element count
    return bce_ratio * bce + (1.0 - bce_ratio) * focal_tversky


def _bft_loss_ref(preds, targets, smooth=1.0, alpha=ALPHA, beta=BETA,
                  gamma=GAMMA, bce_ratio=BCE_RATIO):
    p = preds.reshape(-1).astype(jnp.float32)
    t = targets.reshape(-1).astype(jnp.float32)
    TP = jnp.sum(p * t)
    FP = jnp.sum((1.0 - t) * p)
    FN = jnp.sum(t * (1.0 - p))
    tversky = (TP + smooth) / (TP + alpha * FP + beta * FN + smooth)
    focal_tversky = (1.0 - tversky) ** gamma
    log_p = jnp.maximum(jnp.log(p), -100.0)
    log_1mp = jnp.maximum(jnp.log(1.0 - p), -100.0)
    bce = jnp.mean(-(t * log_p + (1.0 - t) * log_1mp))
    return bce_ratio * bce + (1.0 - bce_ratio) * focal_tversky


if __name__ == "__main__":
    key = jax.random.PRNGKey(0)
    k1, k2 = jax.random.split(key)
    # NCHW example shapes, small: batch=2, channels=4, spatial=16x16
    shape = (2, 4, 16, 16)
    # preds must be probabilities in (0, 1) for binary_cross_entropy
    preds = jax.nn.sigmoid(jax.random.normal(k1, shape, dtype=jnp.float32))
    targets = jax.random.bernoulli(k2, p=0.3, shape=shape).astype(jnp.float32)

    loss = jax.block_until_ready(bft_loss(preds, targets))
    ref = jax.block_until_ready(_bft_loss_ref(preds, targets))

    assert np.isfinite(float(loss)), "non-finite loss"
    assert np.allclose(float(loss), float(ref), rtol=1e-5, atol=1e-5), (
        f"mismatch: pallas={float(loss)} ref={float(ref)}"
    )
    print("KERNEL_OK")
</pallas_src>

<mosaic_0001>
module attributes {stable_mosaic.version = 11 : i64} {
  func.func @kernel(%arg0: i32, %arg1: i32, %arg2: memref<16x128xf32, #tpu.memory_space<vmem>>, %arg3: memref<16x128xf32, #tpu.memory_space<vmem>>, %arg4: memref<1x4x128xf32, #tpu.memory_space<vmem>>, %arg5: memref<1x128xf32, #tpu.memory_space<vmem>>, %arg6: memref<1x128xf32, #tpu.memory_space<vmem>>, %arg7: memref<1x128xf32, #tpu.memory_space<vmem>>, %arg8: memref<1x128xf32, #tpu.memory_space<vmem>>) attributes {dimension_semantics = [#tpu.dimension_semantics<parallel>, #tpu.dimension_semantics<arbitrary>], iteration_bounds = array<i64: 1, 1>, scalar_prefetch = 0 : i64, scratch_operands = 4 : i64, tpu.core_type = #tpu.core_type<tc>, window_params = [{transform_indices = @transform_0, window_bounds = array<i64: 16, 128>}, {transform_indices = @transform_1, window_bounds = array<i64: 16, 128>}, {transform_indices = @transform_2, window_bounds = array<i64: 1, 4, 128>}]} {
    %c0_i32 = arith.constant 0 : i32
    %0 = arith.cmpi eq, %arg1, %c0_i32 : i32
    %1 = arith.extui %0 : i1 to i32
    %c0_i32_0 = arith.constant 0 : i32
    %2 = arith.cmpi ne, %1, %c0_i32_0 : i32
    scf.if %2 {
      %cst = arith.constant 0.000000e+00 : f32
      %16 = vector.broadcast %cst : f32 to vector<1x128xf32>
      %c0_10 = arith.constant 0 : index
      %c0_11 = arith.constant 0 : index
      %17 = vector.load %arg5[%c0_10, %c0_11] : memref<1x128xf32, #tpu.memory_space<vmem>>, vector<1x128xf32>
      tpu.vector_store %arg5[%c0_10, %c0_11], %16 {strides = array<i32>} : memref<1x128xf32, #tpu.memory_space<vmem>>, vector<1x128xf32>,
      %cst_12 = arith.constant 0.000000e+00 : f32
      %18 = vector.broadcast %cst_12 : f32 to vector<1x128xf32>
      %c0_13 = arith.constant 0 : index
      %c0_14 = arith.constant 0 : index
      %19 = vector.load %arg6[%c0_13, %c0_14] : memref<1x128xf32, #tpu.memory_space<vmem>>, vector<1x128xf32>
      tpu.vector_store %arg6[%c0_13, %c0_14], %18 {strides = array<i32>} : memref<1x128xf32, #tpu.memory_space<vmem>>, vector<1x128xf32>,
      %cst_15 = arith.constant 0.000000e+00 : f32
      %20 = vector.broadcast %cst_15 : f32 to vector<1x128xf32>
      %c0_16 = arith.constant 0 : index
      %c0_17 = arith.constant 0 : index
      %21 = vector.load %arg7[%c0_16, %c0_17] : memref<1x128xf32, #tpu.memory_space<vmem>>, vector<1x128xf32>
      tpu.vector_store %arg7[%c0_16, %c0_17], %20 {strides = array<i32>} : memref<1x128xf32, #tpu.memory_space<vmem>>, vector<1x128xf32>,
      %cst_18 = arith.constant 0.000000e+00 : f32
      %22 = vector.broadcast %cst_18 : f32 to vector<1x128xf32>
      %c0_19 = arith.constant 0 : index
      %c0_20 = arith.constant 0 : index
      %23 = vector.load %arg8[%c0_19, %c0_20] : memref<1x128xf32, #tpu.memory_space<vmem>>, vector<1x128xf32>
      tpu.vector_store %arg8[%c0_19, %c0_20], %22 {strides = array<i32>} : memref<1x128xf32, #tpu.memory_space<vmem>>, vector<1x128xf32>,
    } else {
    }
    %c0 = arith.constant 0 : index
    %c0_1 = arith.constant 0 : index
    %3 = vector.load %arg2[%c0, %c0_1] : memref<16x128xf32, #tpu.memory_space<vmem>>, vector<16x128xf32>
    %c0_2 = arith.constant 0 : index
    %c0_3 = arith.constant 0 : index
    %4 = vector.load %arg3[%c0_2, %c0_3] : memref<16x128xf32, #tpu.memory_space<vmem>>, vector<16x128xf32>
    %c1_i32 = arith.constant 1 : i32
    %5 = arith.muli %arg0, %c1_i32 : i32
    %6 = arith.addi %5, %arg1 : i32
    %c1_i32_4 = arith.constant 1 : i32
    %7 = arith.cmpi slt, %6, %c1_i32_4 : i32
    %8 = arith.extui %7 : i1 to i32
    %c0_i32_5 = arith.constant 0 : i32
    %9 = arith.cmpi ne, %8, %c0_i32_5 : i32
    scf.if %9 {
      %16 = math.log %3 : vector<16x128xf32>
      %cst = arith.constant -1.000000e+02 : f32
      %17 = vector.broadcast %cst : f32 to vector<16x128xf32>
      %18 = arith.maximumf %16, %17 : vector<16x128xf32>
      %cst_10 = arith.constant 1.000000e+00 : f32
      %19 = vector.broadcast %cst_10 : f32 to vector<16x128xf32>
      %20 = arith.subf %19, %3 : vector<16x128xf32>
      %21 = math.log %20 : vector<16x128xf32>
      %cst_11 = arith.constant -1.000000e+02 : f32
      %22 = vector.broadcast %cst_11 : f32 to vector<16x128xf32>
      %23 = arith.maximumf %21, %22 : vector<16x128xf32>
      %24 = arith.subf %18, %23 : vector<16x128xf32>
      %25 = arith.mulf %4, %24 : vector<16x128xf32>
      %26 = arith.addf %25, %23 : vector<16x128xf32>
      %c0_12 = arith.constant 0 : index
      %c0_13 = arith.constant 0 : index
      %27 = vector.load %arg5[%c0_12, %c0_13] : memref<1x128xf32, #tpu.memory_space<vmem>>, vector<1x128xf32>
      %28 = arith.mulf %3, %4 : vector<16x128xf32>
      %cst_14 = arith.constant dense<0.000000e+00> : vector<128xf32>
      %29 = vector.multi_reduction <add>, %28, %cst_14 [0] : vector<16x128xf32> to vector<128xf32>
      %30 = vector.shape_cast %29 : vector<128xf32> to vector<1x128xf32>
      %31 = arith.addf %27, %30 : vector<1x128xf32>
      %c0_15 = arith.constant 0 : index
      %c0_16 = arith.constant 0 : index
      %32 = vector.load %arg5[%c0_15, %c0_16] : memref<1x128xf32, #tpu.memory_space<vmem>>, vector<1x128xf32>
      tpu.vector_store %arg5[%c0_15, %c0_16], %31 {strides = array<i32>} : memref<1x128xf32, #tpu.memory_space<vmem>>, vector<1x128xf32>,
      %c0_17 = arith.constant 0 : index
      %c0_18 = arith.constant 0 : index
      %33 = vector.load %arg6[%c0_17, %c0_18] : memref<1x128xf32, #tpu.memory_space<vmem>>, vector<1x128xf32>
      %cst_19 = arith.constant dense<0.000000e+00> : vector<128xf32>
      %34 = vector.multi_reduction <add>, %3, %cst_19 [0] : vector<16x128xf32> to vector<128xf32>
      %35 = vector.shape_cast %34 : vector<128xf32> to vector<1x128xf32>
      %36 = arith.addf %33, %35 : vector<1x128xf32>
      %c0_20 = arith.constant 0 : index
      %c0_21 = arith.constant 0 : index
      %37 = vector.load %arg6[%c0_20, %c0_21] : memref<1x128xf32, #tpu.memory_space<vmem>>, vector<1x128xf32>
      tpu.vector_store %arg6[%c0_20, %c0_21], %36 {strides = array<i32>} : memref<1x128xf32, #tpu.memory_space<vmem>>, vector<1x128xf32>,
      %c0_22 = arith.constant 0 : index
      %c0_23 = arith.constant 0 : index
      %38 = vector.load %arg7[%c0_22, %c0_23] : memref<1x128xf32, #tpu.memory_space<vmem>>, vector<1x128xf32>
      %cst_24 = arith.constant dense<0.000000e+00> : vector<128xf32>
      %39 = vector.multi_reduction <add>, %4, %cst_24 [0] : vector<16x128xf32> to vector<128xf32>
      %40 = vector.shape_cast %39 : vector<128xf32> to vector<1x128xf32>
      %41 = arith.addf %38, %40 : vector<1x128xf32>
      %c0_25 = arith.constant 0 : index
      %c0_26 = arith.constant 0 : index
      %42 = vector.load %arg7[%c0_25, %c0_26] : memref<1x128xf32, #tpu.memory_space<vmem>>, vector<1x128xf32>
      tpu.vector_store %arg7[%c0_25, %c0_26], %41 {strides = array<i32>} : memref<1x128xf32, #tpu.memory_space<vmem>>, vector<1x128xf32>,
      %c0_27 = arith.constant 0 : index
      %c0_28 = arith.constant 0 : index
      %43 = vector.load %arg8[%c0_27, %c0_28] : memref<1x128xf32, #tpu.memory_space<vmem>>, vector<1x128xf32>
      %cst_29 = arith.constant dense<0.000000e+00> : vector<128xf32>
      %44 = vector.multi_reduction <add>, %26, %cst_29 [0] : vector<16x128xf32> to vector<128xf32>
      %45 = vector.shape_cast %44 : vector<128xf32> to vector<1x128xf32>
      %46 = arith.addf %43, %45 : vector<1x128xf32>
      %c0_30 = arith.constant 0 : index
      %c0_31 = arith.constant 0 : index
      %47 = vector.load %arg8[%c0_30, %c0_31] : memref<1x128xf32, #tpu.memory_space<vmem>>, vector<1x128xf32>
      tpu.vector_store %arg8[%c0_30, %c0_31], %46 {strides = array<i32>} : memref<1x128xf32, #tpu.memory_space<vmem>>, vector<1x128xf32>,
    } else {
    }
    %c1_i32_6 = arith.constant 1 : i32
    %10 = arith.cmpi sge, %6, %c1_i32_6 : i32
    %11 = arith.extui %10 : i1 to i32
    %c0_i32_7 = arith.constant 0 : i32
    %12 = arith.cmpi ne, %11, %c0_i32_7 : i32
    scf.if %12 {
      %c2048_i32 = arith.constant 2048 : i32
      %16 = arith.muli %6, %c2048_i32 : i32
      %17 = tpu.iota {dimensions = array<i32: 0>} : vector<16x128xi32>
      %18 = tpu.iota {dimensions = array<i32: 1>} : vector<16x128xi32>
      %c128_i32 = arith.constant 128 : i32
      %19 = vector.broadcast %c128_i32 : i32 to vector<16x128xi32>
      %20 = arith.muli %17, %19 : vector<16x128xi32>
      %21 = vector.broadcast %16 : i32 to vector<16x128xi32>
      %22 = arith.addi %21, %20 : vector<16x128xi32>
      %23 = arith.addi %22, %18 : vector<16x128xi32>
      %c2048_i32_10 = arith.constant 2048 : i32
      %24 = vector.broadcast %c2048_i32_10 : i32 to vector<16x128xi32>
      %25 = arith.cmpi slt, %23, %24 : vector<16x128xi32>
      %cst = arith.constant 0.000000e+00 : f32
      %26 = vector.broadcast %cst : f32 to vector<16x128xf32>
      %27 = arith.select %25, %3, %26 : vector<16x128xi1>, vector<16x128xf32>
      %cst_11 = arith.constant 0.000000e+00 : f32
      %28 = vector.broadcast %cst_11 : f32 to vector<16x128xf32>
      %29 = arith.select %25, %4, %28 : vector<16x128xi1>, vector<16x128xf32>
      %cst_12 = arith.constant 5.000000e-01 : f32
      %30 = vector.broadcast %cst_12 : f32 to vector<16x128xf32>
      %31 = arith.select %25, %3, %30 : vector<16x128xi1>, vector<16x128xf32>
      %32 = math.log %31 : vector<16x128xf32>
      %cst_13 = arith.constant -1.000000e+02 : f32
      %33 = vector.broadcast %cst_13 : f32 to vector<16x128xf32>
      %34 = arith.maximumf %32, %33 : vector<16x128xf32>
      %cst_14 = arith.constant 1.000000e+00 : f32
      %35 = vector.broadcast %cst_14 : f32 to vector<16x128xf32>
      %36 = arith.subf %35, %31 : vector<16x128xf32>
      %37 = math.log %36 : vector<16x128xf32>
      %cst_15 = arith.constant -1.000000e+02 : f32
      %38 = vector.broadcast %cst_15 : f32 to vector<16x128xf32>
      %39 = arith.maximumf %37, %38 : vector<16x128xf32>
      %40 = arith.subf %34, %39 : vector<16x128xf32>
      %41 = arith.mulf %29, %40 : vector<16x128xf32>
      %42 = arith.addf %41, %39 : vector<16x128xf32>
      %cst_16 = arith.constant 0.000000e+00 : f32
      %43 = vector.broadcast %cst_16 : f32 to vector<16x128xf32>
      %44 = arith.select %25, %42, %43 : vector<16x128xi1>, vector<16x128xf32>
      %c0_17 = arith.constant 0 : index
      %c0_18 = arith.constant 0 : index
      %45 = vector.load %arg5[%c0_17, %c0_18] : memref<1x128xf32, #tpu.memory_space<vmem>>, vector<1x128xf32>
      %46 = arith.mulf %27, %29 : vector<16x128xf32>
      %cst_19 = arith.constant dense<0.000000e+00> : vector<128xf32>
      %47 = vector.multi_reduction <add>, %46, %cst_19 [0] : vector<16x128xf32> to vector<128xf32>
      %48 = vector.shape_cast %47 : vector<128xf32> to vector<1x128xf32>
      %49 = arith.addf %45, %48 : vector<1x128xf32>
      %c0_20 = arith.constant 0 : index
      %c0_21 = arith.constant 0 : index
      %50 = vector.load %arg5[%c0_20, %c0_21] : memref<1x128xf32, #tpu.memory_space<vmem>>, vector<1x128xf32>
      tpu.vector_store %arg5[%c0_20, %c0_21], %49 {strides = array<i32>} : memref<1x128xf32, #tpu.memory_space<vmem>>, vector<1x128xf32>,
      %c0_22 = arith.constant 0 : index
      %c0_23 = arith.constant 0 : index
      %51 = vector.load %arg6[%c0_22, %c0_23] : memref<1x128xf32, #tpu.memory_space<vmem>>, vector<1x128xf32>
      %cst_24 = arith.constant dense<0.000000e+00> : vector<128xf32>
      %52 = vector.multi_reduction <add>, %27, %cst_24 [0] : vector<16x128xf32> to vector<128xf32>
      %53 = vector.shape_cast %52 : vector<128xf32> to vector<1x128xf32>
      %54 = arith.addf %51, %53 : vector<1x128xf32>
      %c0_25 = arith.constant 0 : index
      %c0_26 = arith.constant 0 : index
      %55 = vector.load %arg6[%c0_25, %c0_26] : memref<1x128xf32, #tpu.memory_space<vmem>>, vector<1x128xf32>
      tpu.vector_store %arg6[%c0_25, %c0_26], %54 {strides = array<i32>} : memref<1x128xf32, #tpu.memory_space<vmem>>, vector<1x128xf32>,
      %c0_27 = arith.constant 0 : index
      %c0_28 = arith.constant 0 : index
      %56 = vector.load %arg7[%c0_27, %c0_28] : memref<1x128xf32, #tpu.memory_space<vmem>>, vector<1x128xf32>
      %cst_29 = arith.constant dense<0.000000e+00> : vector<128xf32>
      %57 = vector.multi_reduction <add>, %29, %cst_29 [0] : vector<16x128xf32> to vector<128xf32>
      %58 = vector.shape_cast %57 : vector<128xf32> to vector<1x128xf32>
      %59 = arith.addf %56, %58 : vector<1x128xf32>
      %c0_30 = arith.constant 0 : index
      %c0_31 = arith.constant 0 : index
      %60 = vector.load %arg7[%c0_30, %c0_31] : memref<1x128xf32, #tpu.memory_space<vmem>>, vector<1x128xf32>
      tpu.vector_store %arg7[%c0_30, %c0_31], %59 {strides = array<i32>} : memref<1x128xf32, #tpu.memory_space<vmem>>, vector<1x128xf32>,
      %c0_32 = arith.constant 0 : index
      %c0_33 = arith.constant 0 : index
      %61 = vector.load %arg8[%c0_32, %c0_33] : memref<1x128xf32, #tpu.memory_space<vmem>>, vector<1x128xf32>
      %cst_34 = arith.constant dense<0.000000e+00> : vector<128xf32>
      %62 = vector.multi_reduction <add>, %44, %cst_34 [0] : vector<16x128xf32> to vector<128xf32>
      %63 = vector.shape_cast %62 : vector<128xf32> to vector<1x128xf32>
      %64 = arith.addf %61, %63 : vector<1x128xf32>
      %c0_35 = arith.constant 0 : index
      %c0_36 = arith.constant 0 : index
      %65 = vector.load %arg8[%c0_35, %c0_36] : memref<1x128xf32, #tpu.memory_space<vmem>>, vector<1x128xf32>
      tpu.vector_store %arg8[%c0_35, %c0_36], %64 {strides = array<i32>} : memref<1x128xf32, #tpu.memory_space<vmem>>, vector<1x128xf32>,
    } else {
    }
    %c0_i32_8 = arith.constant 0 : i32
    %13 = arith.cmpi eq, %arg1, %c0_i32_8 : i32
    %14 = arith.extui %13 : i1 to i32
    %c0_i32_9 = arith.constant 0 : i32
    %15 = arith.cmpi ne, %14, %c0_i32_9 : i32
    scf.if %15 {
      %c0_10 = arith.constant 0 : index
      %c0_11 = arith.constant 0 : index
      %16 = vector.load %arg5[%c0_10, %c0_11] : memref<1x128xf32, #tpu.memory_space<vmem>>, vector<1x128xf32>
      %c0_12 = arith.constant 0 : index
      %c0_13 = arith.constant 0 : index
      %17 = vector.load %arg6[%c0_12, %c0_13] : memref<1x128xf32, #tpu.memory_space<vmem>>, vector<1x128xf32>
      %c0_14 = arith.constant 0 : index
      %c0_15 = arith.constant 0 : index
      %18 = vector.load %arg7[%c0_14, %c0_15] : memref<1x128xf32, #tpu.memory_space<vmem>>, vector<1x128xf32>
      %c0_16 = arith.constant 0 : index
      %c0_17 = arith.constant 0 : index
      %19 = vector.load %arg8[%c0_16, %c0_17] : memref<1x128xf32, #tpu.memory_space<vmem>>, vector<1x128xf32>
      %20 = tpu.concatenate %16, %17, %18, %19 in 0 : vector<1x128xf32>, vector<1x128xf32>, vector<1x128xf32>, vector<1x128xf32> -> vector<4x128xf32>
      %c0_18 = arith.constant 0 : index
      %c0_19 = arith.constant 0 : index
      %c0_20 = arith.constant 0 : index
      %21 = vector.load %arg4[%c0_18, %c0_19, %c0_20] : memref<1x4x128xf32, #tpu.memory_space<vmem>>, vector<1x4x128xf32>
      %22 = vector.shape_cast %21 : vector<1x4x128xf32> to vector<4x128xf32>
      %23 = vector.shape_cast %20 : vector<4x128xf32> to vector<1x4x128xf32>
      tpu.vector_store %arg4[%c0_18, %c0_19, %c0_20], %23 {strides = array<i32>} : memref<1x4x128xf32, #tpu.memory_space<vmem>>, vector<1x4x128xf32>,
    } else {
    }
    return
  }
  func.func @transform_0(%arg0: i32, %arg1: i32) -> (i32, i32) {
    %c1_i32 = arith.constant 1 : i32
    %0 = arith.muli %arg0, %c1_i32 : i32
    %1 = arith.addi %0, %arg1 : i32
    %c0_i32 = arith.constant 0 : i32
    %2 = arith.minsi %1, %c0_i32 : i32
    %c0_i32_0 = arith.constant 0 : i32
    %c0_i32_1 = arith.constant 0 : i32
    return %2, %c0_i32_0 : i32, i32
  }
  func.func @transform_1(%arg0: i32, %arg1: i32) -> (i32, i32) {
    %c1_i32 = arith.constant 1 : i32
    %0 = arith.muli %arg0, %c1_i32 : i32
    %1 = arith.addi %0, %arg1 : i32
    %c0_i32 = arith.constant 0 : i32
    %2 = arith.minsi %1, %c0_i32 : i32
    %c0_i32_0 = arith.constant 0 : i32
    %c0_i32_1 = arith.constant 0 : i32
    return %2, %c0_i32_0 : i32, i32
  }
  func.func @transform_2(%arg0: i32, %arg1: i32) -> (i32, i32, i32) {
    %c0_i32 = arith.constant 0 : i32
    %c0_i32_0 = arith.constant 0 : i32
    %c0_i32_1 = arith.constant 0 : i32
    return %arg0, %c0_i32, %c0_i32_0 : i32, i32, i32
  }
}

</mosaic_0001>

<llo_original>
// kernel: tpu_custom_call.1
$region0: #{tpu_custom_call.1}
  #allocation0 [shape = 'u32[]', space=smem, size = 0x4, offset = 0x4, fixed_abs, tag = 'smem constant byte address 0x4 - core index']
  #allocation1 [shape = 'u32[144,128]{1,0:T(1,128)}', space=vmem, size = 0x12000, scoped, tag = 'internal scratch']
  #allocation2 [shape = 'f32[1,128]{1,0:T(1,128)}', space=vmem, size = 0x200, scoped, tag = 'scratch operand']
  #allocation3 [shape = 'f32[1,128]{1,0:T(1,128)}', space=vmem, size = 0x200, scoped, tag = 'scratch operand']
  #allocation4 [shape = 'f32[1,128]{1,0:T(1,128)}', space=vmem, size = 0x200, scoped, tag = 'scratch operand']
  #allocation5 [shape = 'f32[1,128]{1,0:T(1,128)}', space=vmem, size = 0x200, scoped, tag = 'scratch operand']
  %s0 = inlined_call_operand.hbm [shape: f32[16,128], index: 0, kind: input, shape index: {}]
  %s1 = inlined_call_operand.hbm [shape: f32[16,128], index: 1, kind: input, shape index: {}]
  %s2 = inlined_call_operand.hbm [shape: f32[1,4,128], index: 2, kind: output, shape index: {}]
  %s3 = sld [smem:[#allocation0]]
  $region42: #{tpu_custom_call.1} parent=0
    _
  %s5 = ssub.s32 1, %s3
  %s6 = scalar_select 0, %s5, %s3
  $region1: #{tpu_custom_call.1} parent=0
    #allocation6 [shape = 'u8[8192]{0}', space=vmem, size = 0x2000, scoped, tag = 'input window, operand 0, single buffered']
    #allocation7 [shape = 's32[1]{0}', space=sflag, size = 0x4, scoped, tag = 'scoped memory for tpu_custom_call.1']
    #allocation8 [shape = 's32[1]{0}', space=sflag, size = 0x4, scoped, tag = 'scoped memory for tpu_custom_call.1']
    #allocation9 [shape = 'u8[8192]{0}', space=vmem, size = 0x2000, scoped, tag = 'input window, operand 1, single buffered']
    #allocation10 [shape = 's32[1]{0}', space=sflag, size = 0x4, scoped, tag = 'scoped memory for tpu_custom_call.1']
    #allocation11 [shape = 'u8[2048]{0}', space=vmem, size = 0x800, scoped, tag = 'output window, operand 0, single buffered']
    %7 = vsyncpa [#allocation7], 0
    %8 = vsyncpa [#allocation10], 0
    %9 = vsyncpa [#allocation8], 0
    // Predicated region
    $region2: #{tpu_custom_call.1} parent=1 // pred_check
      _
    $region3: #{tpu_custom_call.1} parent=1 // pred_check_branch
      %11 = sbr.rel (0) target = $region5
    $region4: #{tpu_custom_call.1} parent=1 // pred_region
      %s12 = sadd.s32 0, 0
      %p13 = scmp.lt.s32.totalorder %s12, 0
      %s14 = scalar_select %p13, %s12, 0
      %s15 = smul.u32 2, %s14
      %s17 = ssub.s32 256, 256
      %18 = vsyncadd [#allocation7], %s17
      %s19 = smul.addr %s15, 128
      %s20 = scalar_lea.hbm %s0, %s19
      %s21 = sshll.u32 [#allocation6], 4
      %s22 = int_to_ptr.vmem [resolvable:$true] %s21
      %27 = dma.hbm_to_vmem [thread:$0]  %s20, 256, %s22, [#allocation7], 128, 128, 8
    $region5: #{tpu_custom_call.1} parent=1 // pred_fallthru
      _
    // Predicated region
    $region6: #{tpu_custom_call.1} parent=1 // pred_check
      _
    $region7: #{tpu_custom_call.1} parent=1 // pred_check_branch
      %29 = sbr.rel (0) target = $region9
    $region8: #{tpu_custom_call.1} parent=1 // pred_region
      %s30 = sadd.s32 0, 0
      %p31 = scmp.lt.s32.totalorder %s30, 0
      %s32 = scalar_select %p31, %s30, 0
      %s33 = smul.u32 2, %s32
      %s35 = ssub.s32 256, 256
      %36 = vsyncadd [#allocation10], %s35
      %s37 = smul.addr %s33, 128
      %s38 = scalar_lea.hbm %s1, %s37
      %s39 = sshll.u32 [#allocation9], 4
      %s40 = int_to_ptr.vmem [resolvable:$true] %s39
      %45 = dma.hbm_to_vmem [thread:$0]  %s38, 256, %s40, [#allocation10], 128, 128, 8
    $region9: #{tpu_custom_call.1} parent=1 // pred_fallthru
      _
    // Predicated region
    $region10: #{tpu_custom_call.1} parent=1 // pred_check
      _
    $region11: #{tpu_custom_call.1} parent=1 // pred_check_branch
      %47 = sbr.rel (0) target = $region13
    $region12: #{tpu_custom_call.1} parent=1 // pred_region
      %48 = dma.done [#allocation7], 256
    $region13: #{tpu_custom_call.1} parent=1 // pred_fallthru
      _
    // Predicated region
    $region14: #{tpu_custom_call.1} parent=1 // pred_check
      _
    $region15: #{tpu_custom_call.1} parent=1 // pred_check_branch
      %50 = sbr.rel (0) target = $region17
    $region16: #{tpu_custom_call.1} parent=1 // pred_region
      %51 = dma.done [#allocation10], 256
    $region17: #{tpu_custom_call.1} parent=1 // pred_fallthru
      _
    %s52 = sadd.s32 0, 0
    %p53 = scmp.lt.s32.totalorder %s52, 0
    %s54 = scalar_select %p53, %s52, 0
    %s55 = smul.u32 2, %s54
    %s56 = sadd.s32 0, 0
    %p57 = scmp.lt.s32.totalorder %s56, 0
    %s58 = scalar_select %p57, %s56, 0
    %s59 = smul.u32 2, %s58
    %p60 = scmp.eq.s32.totalorder 0, 0
    // Predicated region
    $region18: #{tpu_custom_call.1} parent=1 // pred_check
      %p61 = pneg %p60
    $region19: #{tpu_custom_call.1} parent=1 // pred_check_branch
      %63 = sbr.rel (%p61) target = $region21
    $region20: #{tpu_custom_call.1} parent=1 // pred_region
      %64 = vst [vmem:[#allocation2] sm:$0x1] 0.0
      %65 = vst [vmem:[#allocation3] sm:$0x1] 0.0
      %66 = vst [vmem:[#allocation4] sm:$0x1] 0.0
      %67 = vst [vmem:[#allocation5] sm:$0x1] 0.0
    $region21: #{tpu_custom_call.1} parent=1 // pred_fallthru
      _
    %v68 = vld [vmem:[#allocation6] sm:$0xff]
    %v69 = vld [vmem:[#allocation6 + $0x8] sm:$0xff]
    %v70 = vld [vmem:[#allocation9] sm:$0xff]
    %v71 = vld [vmem:[#allocation9 + $0x8] sm:$0xff]
    %s72 = sadd.s32 0, 0
    %p73 = scmp.lt.s32.totalorder %s72, 1
    // Predicated region
    $region22: #{tpu_custom_call.1} parent=1 // pred_check
      %p74 = pneg %p73
    $region23: #{tpu_custom_call.1} parent=1 // pred_check_branch
      %76 = sbr.rel (%p74) target = $region25
    $region24: #{tpu_custom_call.1} parent=1 // pred_region
      %v77 = vlog2.pop %v68
      %v78 = vmul.f32 %v77, 0.6931472
      %v79 = vlog2.pop %v69
      %v80 = vmul.f32 %v79, 0.6931472
      %v81 = vmax.f32 %v78, -100.0
      %v82 = vmax.f32 %v80, -100.0
      %v83 = vsub.f32 1.0, %v68
      %v84 = vsub.f32 1.0, %v69
      %v85 = vlog2.pop %v83
      %v86 = vmul.f32 %v85, 0.6931472
      %v87 = vlog2.pop %v84
      %v88 = vmul.f32 %v87, 0.6931472
      %v89 = vmax.f32 %v86, -100.0
      %v90 = vmax.f32 %v88, -100.0
      %v91 = vsub.f32 %v81, %v89
      %v92 = vsub.f32 %v82, %v90
      %v93 = vmul.f32 %v70, %v91
      %v94 = vmul.f32 %v71, %v92
      %v95 = vadd.f32 %v93, %v89
      %v96 = vadd.f32 %v94, %v90
      %v97 = vld [vmem:[#allocation2] sm:$0x1]
      %v98 = vmul.f32 %v68, %v70
      %v99 = vmul.f32 %v69, %v71
      %v100 = vadd.f32 %v98, %v99
      %v101 = vrot.slane %v100, 4
      %v102 = vadd.f32 %v100, %v101
      %v103 = vrot.slane %v102, 2
      %v104 = vadd.f32 %v102, %v103
      %v105 = vrot.slane %v104, 1
      %v106 = vadd.f32 %v104, %v105
      %v107 = vadd.f32 %v97, %v106
      %108 = vst [vmem:[#allocation2] sm:$0x1] %v107
      %v109 = vld [vmem:[#allocation3] sm:$0x1]
      %v110 = vadd.f32 %v68, %v69
      %v111 = vrot.slane %v110, 4
      %v112 = vadd.f32 %v110, %v111
      %v113 = vrot.slane %v112, 2
      %v114 = vadd.f32 %v112, %v113
      %v115 = vrot.slane %v114, 1
      %v116 = vadd.f32 %v114, %v115
      %v117 = vadd.f32 %v109, %v116
      %118 = vst [vmem:[#allocation3] sm:$0x1] %v117
      %v119 = vld [vmem:[#allocation4] sm:$0x1]
      %v120 = vadd.f32 %v70, %v71
      %v121 = vrot.slane %v120, 4
      %v122 = vadd.f32 %v120, %v121
      %v123 = vrot.slane %v122, 2
      %v124 = vadd.f32 %v122, %v123
      %v125 = vrot.slane %v124, 1
      %v126 = vadd.f32 %v124, %v125
      %v127 = vadd.f32 %v119, %v126
      %128 = vst [vmem:[#allocation4] sm:$0x1] %v127
      %v129 = vld [vmem:[#allocation5] sm:$0x1]
      %v130 = vadd.f32 %v95, %v96
      %v131 = vrot.slane %v130, 4
      %v132 = vadd.f32 %v130, %v131
      %v133 = vrot.slane %v132, 2
      %v134 = vadd.f32 %v132, %v133
      %v135 = vrot.slane %v134, 1
      %v136 = vadd.f32 %v134, %v135
      %v137 = vadd.f32 %v129, %v136
      %138 = vst [vmem:[#allocation5] sm:$0x1] %v137
    $region25: #{tpu_custom_call.1} parent=1 // pred_fallthru
      _
    %p139 = scmp.ge.s32.totalorder %s72, 1
    // Predicated region
    $region26: #{tpu_custom_call.1} parent=1 // pred_check
      %p140 = pneg %p139
    $region27: #{tpu_custom_call.1} parent=1 // pred_check_branch
      %142 = sbr.rel (%p140) target = $region29
    $region28: #{tpu_custom_call.1} parent=1 // pred_region
      %s143 = smul.u32 %s72, 2048
      %v144 = vlaneseq
      %v145 = vshrl.u32 %v144, 7
      %v146 = vadd.s32 %v145, 8
      %v147 = vlaneseq
      %v148 = vand.u32 %v147, 127
      %v149 = vmul.u32 %v145, 128
      %v150 = vmul.u32 %v146, 128
      %v151 = vstv %s143
      %v152 = vadd.s32 %v151, %v149
      %v153 = vadd.s32 %v151, %v150
      %v154 = vadd.s32 %v152, %v148
      %v155 = vadd.s32 %v153, %v148
      %vm156 = vcmp.lt.s32.totalorder %v154, 2048
      %vm157 = vcmp.lt.s32.totalorder %v155, 2048
      %v158 = vsel %vm156, %v68, 0.0
      %v159 = vsel %vm157, %v69, 0.0
      %v160 = vsel %vm156, %v70, 0.0
      %v161 = vsel %vm157, %v71, 0.0
      %v162 = vsel %vm156, %v68, 0.5
      %v163 = vsel %vm157, %v69, 0.5
      %v164 = vlog2.pop %v162
      %v165 = vmul.f32 %v164, 0.6931472
      %v166 = vlog2.pop %v163
      %v167 = vmul.f32 %v166, 0.6931472
      %v168 = vmax.f32 %v165, -100.0
      %v169 = vmax.f32 %v167, -100.0
      %v170 = vsub.f32 1.0, %v162
      %v171 = vsub.f32 1.0, %v163
      %v172 = vlog2.pop %v170
      %v173 = vmul.f32 %v172, 0.6931472
      %v174 = vlog2.pop %v171
      %v175 = vmul.f32 %v174, 0.6931472
      %v176 = vmax.f32 %v173, -100.0
      %v177 = vmax.f32 %v175, -100.0
      %v178 = vsub.f32 %v168, %v176
      %v179 = vsub.f32 %v169, %v177
      %v180 = vmul.f32 %v160, %v178
      %v181 = vmul.f32 %v161, %v179
      %v182 = vadd.f32 %v180, %v176
      %v183 = vadd.f32 %v181, %v177
      %v184 = vsel %vm156, %v182, 0.0
      %v185 = vsel %vm157, %v183, 0.0
      %v186 = vld [vmem:[#allocation2] sm:$0x1]
      %v187 = vmul.f32 %v158, %v160
      %v188 = vmul.f32 %v159, %v161
      %v189 = vadd.f32 %v187, %v188
      %v190 = vrot.slane %v189, 4
      %v191 = vadd.f32 %v189, %v190
      %v192 = vrot.slane %v191, 2
      %v193 = vadd.f32 %v191, %v192
      %v194 = vrot.slane %v193, 1
      %v195 = vadd.f32 %v193, %v194
      %v196 = vadd.f32 %v186, %v195
      %197 = vst [vmem:[#allocation2] sm:$0x1] %v196
      %v198 = vld [vmem:[#allocation3] sm:$0x1]
      %v199 = vadd.f32 %v158, %v159
      %v200 = vrot.slane %v199, 4
      %v201 = vadd.f32 %v199, %v200
      %v202 = vrot.slane %v201, 2
      %v203 = vadd.f32 %v201, %v202
      %v204 = vrot.slane %v203, 1
      %v205 = vadd.f32 %v203, %v204
      %v206 = vadd.f32 %v198, %v205
      %207 = vst [vmem:[#allocation3] sm:$0x1] %v206
      %v208 = vld [vmem:[#allocation4] sm:$0x1]
      %v209 = vadd.f32 %v160, %v161
      %v210 = vrot.slane %v209, 4
      %v211 = vadd.f32 %v209, %v210
      %v212 = vrot.slane %v211, 2
      %v213 = vadd.f32 %v211, %v212
      %v214 = vrot.slane %v213, 1
      %v215 = vadd.f32 %v213, %v214
      %v216 = vadd.f32 %v208, %v215
      %217 = vst [vmem:[#allocation4] sm:$0x1] %v216
      %v218 = vld [vmem:[#allocation5] sm:$0x1]
      %v219 = vadd.f32 %v184, %v185
      %v220 = vrot.slane %v219, 4
      %v221 = vadd.f32 %v219, %v220
      %v222 = vrot.slane %v221, 2
      %v223 = vadd.f32 %v221, %v222
      %v224 = vrot.slane %v223, 1
      %v225 = vadd.f32 %v223, %v224
      %v226 = vadd.f32 %v218, %v225
      %227 = vst [vmem:[#allocation5] sm:$0x1] %v226
    $region29: #{tpu_custom_call.1} parent=1 // pred_fallthru
      _
    // Predicated region
    $region30: #{tpu_custom_call.1} parent=1 // pred_check
      %p228 = pneg %p60
    $region31: #{tpu_custom_call.1} parent=1 // pred_check_branch
      %230 = sbr.rel (%p228) target = $region33
    $region32: #{tpu_custom_call.1} parent=1 // pred_region
      %v231 = vld [vmem:[#allocation2] sm:$0x1]
      %v232 = vld [vmem:[#allocation3] sm:$0x1]
      %v233 = vld [vmem:[#allocation4] sm:$0x1]
      %v234 = vld [vmem:[#allocation5] sm:$0x1]
      %v236 = vlaneseq
      %v237 = vshrl.u32 %v236, 7
      %v238 = vsub.s32 0, %v237
      %v239 = vrot.slane %v232, %v238
      %v242 = vlaneseq
      %v243 = vshrl.u32 %v242, 7
      %v244 = vsub.s32 0, %v243
      %v245 = vrot.slane %v233, %v244
      %v248 = vlaneseq
      %v249 = vshrl.u32 %v248, 7
      %v250 = vsub.s32 0, %v249
      %v251 = vrot.slane %v234, %v250
      %vm253 = vcmask 1040384
      %v254 = vsel %vm253, %v231, %v239
      %vm255 = vcmask 1041408
      %v256 = vsel %vm255, %v254, %v245
      %vm257 = vcmask 1042432
      %v258 = vsel %vm257, %v256, %v251
      %259 = vst [vmem:[#allocation11] sm:$0xf] %v258
    $region33: #{tpu_custom_call.1} parent=1 // pred_fallthru
      _
    // Predicated region
    $region34: #{tpu_custom_call.1} parent=1 // pred_check
      _
    $region35: #{tpu_custom_call.1} parent=1 // pred_check_branch
      %261 = sbr.rel (0) target = $region37
    $region36: #{tpu_custom_call.1} parent=1 // pred_region
      %s263 = ssub.s32 64, 64
      %264 = vsyncadd [#allocation8], %s263
      %s266 = sshll.u32 [#allocation11], 4
      %s267 = int_to_ptr.vmem [resolvable:$true] %s266
      %269 = dma.vmem_to_hbm [thread:$0]  %s267, 64, %s2, [#allocation8]
    $region37: #{tpu_custom_call.1} parent=1 // pred_fallthru
      _
    // Predicated region
    $region38: #{tpu_custom_call.1} parent=1 // pred_check
      _
    $region39: #{tpu_custom_call.1} parent=1 // pred_check_branch
      %271 = sbr.rel (0) target = $region41
    $region40: #{tpu_custom_call.1} parent=1 // pred_region
      %272 = dma.done [#allocation8], 64
    $region41: #{tpu_custom_call.1} parent=1 // pred_fallthru
      _
    %273 = vsyncpa [#allocation7], 1
    %274 = vsyncpa [#allocation10], 1
    %275 = vsyncpa [#allocation8], 1

</llo_original>
